<compile_context>
chip_gen: v7x
topology: tpu7x:2x2x1
jax: 0.10.0
libtpu: 0.0.40
codegen_flags: <defaults>
</compile_context>

<pallas_src>
import jax
import jax.numpy as jnp
from jax.experimental import pallas as pl
from jax.experimental.pallas import tpu as pltpu

LANE = 128
MAX_TILE_ROWS = 4096   # 4096 rows * 128 lanes = 524288 samples, 6 MiB f32 slab per tile
NUM_CORES = 2          # outer "parallel" grid axis (v7x has 2 TCs; no-op elsewhere)


def _cdiv(a, b):
    return -(-a // b)


def _round_up(x, m):
    return ((x + m - 1) // m) * m


def crop_loss_kernel(slab_ref, acc_ref):
    # slab_ref : VMEM (3, TILE_ROWS, 128)  -- diff planes d0, d1, d2 (lane-dense)
    # acc_ref  : VMEM (8, 128) f32         -- per-core grid-resident partial sums
    @pl.when(pl.program_id(1) == 0)
    def _():
        acc_ref[...] = jnp.zeros_like(acc_ref)

    d0 = slab_ref[0].astype(jnp.float32)   # (TILE_ROWS, 128), fully lane-dense vregs
    d1 = slab_ref[1].astype(jnp.float32)
    d2 = slab_ref[2].astype(jnp.float32)

    norms = jnp.sqrt(d0 * d0 + d1 * d1 + d2 * d2)          # VPU mul/add + EUP sqrt

    # Reduce TILE_ROWS -> 8 with pure elementwise (VPU) adds of whole (8,128)
    # vregs; no cross-lane/XLU work and no masked scalar store in the hot loop.
    acc_ref[...] += jnp.sum(norms.reshape(-1, 8, LANE), axis=0)


def crop_loss(z_v_out, velocity, location, div_distance, *, use_bf16_slab=False):
    """z_v_out: (N,3), velocity: (N,2), location: (N,2)  ->  scalar f32 loss."""
    z_v_out = jnp.asarray(z_v_out, jnp.float32)
    velocity = jnp.asarray(velocity, jnp.float32)
    location = jnp.asarray(location, jnp.float32)

    n_samples = z_v_out.shape[0]
    if n_samples == 0:
        return jnp.float32(float("nan"))   # torch .mean() over an empty tensor

    # ---- tiling: bounded padding (<8 rows per tile), even number of tiles ----
    rows = _cdiv(n_samples, LANE)                         # sample rows of 128 lanes
    num_tiles = NUM_CORES * max(1, _cdiv(rows, NUM_CORES * MAX_TILE_ROWS))
    tile_rows = _round_up(_cdiv(rows, num_tiles), 8)      # (8,128) sublane alignment
    rows_pad = num_tiles * tile_rows
    n_pad = rows_pad * LANE
    tiles_per_core = num_tiles // NUM_CORES

    slab_dtype = jnp.bfloat16 if use_bf16_slab else jnp.float32

    # ---- single fused pack pass: read the originals once, emit 3 diff planes.
    # The scale/subtract live here because this pass over the inputs exists
    # anyway; fusing them shrinks the slab from 6 planes to 3 (less HBM).
    d0 = jnp.float32(div_distance) * location[:, 0] - z_v_out[:, 0]
    d1 = velocity[:, 0] - z_v_out[:, 1]
    d2 = velocity[:, 1] - z_v_out[:, 2]

    def lanes(col):  # (N,) -> (num_tiles, tile_rows, 128), zero-padded
        return jnp.pad(col, (0, n_pad - n_samples)).reshape(num_tiles, tile_rows, LANE)

    # (num_tiles, 3, tile_rows, 128): each grid block is one contiguous DMA.
    slab = jnp.stack([lanes(d0), lanes(d1), lanes(d2)], axis=1).astype(slab_dtype)

    partials = pl.pallas_call(
        crop_loss_kernel,
        out_shape=jax.ShapeDtypeStruct((NUM_CORES, 8, LANE), jnp.float32),
        grid=(NUM_CORES, tiles_per_core),
        in_specs=[
            pl.BlockSpec(
                (None, 3, tile_rows, LANE),
                lambda c, i: (c * tiles_per_core + i, 0, 0, 0),
            ),
        ],
        out_specs=pl.BlockSpec((None, 8, LANE), lambda c, i: (c, 0, 0)),
        compiler_params=pltpu.CompilerParams(
            dimension_semantics=("parallel", "arbitrary"),
            vmem_limit_bytes=32 * 1024 * 1024,
        ),
    )(slab)

    # Padded samples contribute sqrt(0) = 0, so the sum is exact; divide by true N.
    return jnp.sum(partials) / jnp.float32(n_samples)


def crop_loss_module(output, target, div_distance, *, use_bf16_slab=False):
    """Mirror of CropLoss.forward; `target` is a dict of arrays (torch-style shapes)."""
    n, b, c, h, w = target["second_image"].shape
    velocity_true = target["velocity"].reshape(n * b, 2)
    position_true = target["location"].reshape(n * b, 2)
    return crop_loss(jnp.asarray(output), velocity_true, position_true,
                     div_distance, use_bf16_slab=use_bf16_slab)


def _reference(output, target, div_distance):
    n, b, c, h, w = target["second_image"].shape
    velocity_true = target["velocity"].reshape(n * b, 2).astype(jnp.float32)
    position_true = target["location"].reshape(n * b, 2).astype(jnp.float32)
    z_v_true = jnp.concatenate(
        [div_distance * position_true[:, 0:1], velocity_true], axis=1
    )
    diff = z_v_true - output.astype(jnp.float32)
    return jnp.mean(jnp.linalg.norm(diff, ord=2, axis=1))


if __name__ == "__main__":
    key = jax.random.PRNGKey(0)
    k1, k2, k3, k4, k5, k6, k7 = jax.random.split(key, 7)

    # --- module-shaped smoke test: n sequences, b batch, NCHW second_image ---
    n, b, c, h, w = 2, 4, 3, 16, 16
    div_distance = 0.5
    target = {
        "second_image": jax.random.normal(k1, (n, b, c, h, w), dtype=jnp.float32),
        "velocity": jax.random.normal(k2, (n, b, 2), dtype=jnp.float32),
        "location": jax.random.normal(k3, (n, b, 2), dtype=jnp.float32),
    }
    output = jax.random.normal(k4, (n * b, 3), dtype=jnp.float32)  # z_v_out

    loss = crop_loss_module(output, target, div_distance)
    jax.block_until_ready(loss)
    ref = _reference(output, target, div_distance)
    assert jnp.allclose(loss, ref, rtol=1e-5, atol=1e-5), (loss, ref)

    # --- non-divisible N exercising both grid cells + row padding ------------
    n2 = 5000
    z2 = jax.random.normal(k5, (n2, 3), dtype=jnp.float32)
    v2 = jax.random.normal(k6, (n2, 2), dtype=jnp.float32)
    p2 = jax.random.normal(k7, (n2, 2), dtype=jnp.float32)
    loss2 = crop_loss(z2, v2, p2, div_distance)
    jax.block_until_ready(loss2)
    ref2 = jnp.mean(jnp.linalg.norm(
        jnp.concatenate([div_distance * p2[:, 0:1], v2], axis=1) - z2, axis=1))
    assert jnp.allclose(loss2, ref2, rtol=1e-5, atol=1e-5), (loss2, ref2)

    # --- optional bf16 slab path (halves slab HBM bytes; looser tolerance) ---
    loss2_bf16 = crop_loss(z2, v2, p2, div_distance, use_bf16_slab=True)
    jax.block_until_ready(loss2_bf16)
    assert jnp.allclose(loss2_bf16, ref2, rtol=3e-2, atol=3e-2), (loss2_bf16, ref2)

    print("KERNEL_OK")
</pallas_src>

<mosaic_0001>
module attributes {stable_mosaic.version = 11 : i64} {
  func.func @crop_loss_kernel(%arg0: i32, %arg1: i32, %arg2: memref<1x3x8x128xf32, #tpu.memory_space<vmem>>, %arg3: memref<1x8x128xf32, #tpu.memory_space<vmem>>) attributes {dimension_semantics = [#tpu.dimension_semantics<parallel>, #tpu.dimension_semantics<arbitrary>], iteration_bounds = array<i64: 2, 1>, scalar_prefetch = 0 : i64, scratch_operands = 0 : i64, tpu.core_type = #tpu.core_type<tc>, window_params = [{transform_indices = @transform_0, window_bounds = array<i64: 1, 3, 8, 128>}, {transform_indices = @transform_1, window_bounds = array<i64: 1, 8, 128>}]} {
    %c0_i32 = arith.constant 0 : i32
    %0 = arith.cmpi eq, %arg1, %c0_i32 : i32
    %1 = arith.extui %0 : i1 to i32
    %c0_i32_0 = arith.constant 0 : i32
    %2 = arith.cmpi ne, %1, %c0_i32_0 : i32
    scf.if %2 {
      %cst_16 = arith.constant 0.000000e+00 : f32
      %23 = vector.broadcast %cst_16 : f32 to vector<8x128xf32>
      %c0_17 = arith.constant 0 : index
      %c0_18 = arith.constant 0 : index
      %c0_19 = arith.constant 0 : index
      %24 = vector.load %arg3[%c0_17, %c0_18, %c0_19] : memref<1x8x128xf32, #tpu.memory_space<vmem>>, vector<1x8x128xf32>
      %25 = vector.shape_cast %24 : vector<1x8x128xf32> to vector<8x128xf32>
      %26 = vector.shape_cast %23 : vector<8x128xf32> to vector<1x8x128xf32>
      tpu.vector_store %arg3[%c0_17, %c0_18, %c0_19], %26 {strides = array<i32>} : memref<1x8x128xf32, #tpu.memory_space<vmem>>, vector<1x8x128xf32>,
    } else {
    }
    %c0 = arith.constant 0 : index
    %c0_1 = arith.constant 0 : index
    %c0_2 = arith.constant 0 : index
    %c0_3 = arith.constant 0 : index
    %3 = vector.load %arg2[%c0, %c0_1, %c0_2, %c0_3] : memref<1x3x8x128xf32, #tpu.memory_space<vmem>>, vector<1x1x8x128xf32>
    %4 = vector.shape_cast %3 : vector<1x1x8x128xf32> to vector<8x128xf32>
    %c0_4 = arith.constant 0 : index
    %c1 = arith.constant 1 : index
    %c0_5 = arith.constant 0 : index
    %c0_6 = arith.constant 0 : index
    %5 = vector.load %arg2[%c0_4, %c1, %c0_5, %c0_6] : memref<1x3x8x128xf32, #tpu.memory_space<vmem>>, vector<1x1x8x128xf32>
    %6 = vector.shape_cast %5 : vector<1x1x8x128xf32> to vector<8x128xf32>
    %c0_7 = arith.constant 0 : index
    %c2 = arith.constant 2 : index
    %c0_8 = arith.constant 0 : index
    %c0_9 = arith.constant 0 : index
    %7 = vector.load %arg2[%c0_7, %c2, %c0_8, %c0_9] : memref<1x3x8x128xf32, #tpu.memory_space<vmem>>, vector<1x1x8x128xf32>
    %8 = vector.shape_cast %7 : vector<1x1x8x128xf32> to vector<8x128xf32>
    %9 = arith.mulf %4, %4 : vector<8x128xf32>
    %10 = arith.mulf %6, %6 : vector<8x128xf32>
    %11 = arith.addf %9, %10 : vector<8x128xf32>
    %12 = arith.mulf %8, %8 : vector<8x128xf32>
    %13 = arith.addf %11, %12 : vector<8x128xf32>
    %14 = math.sqrt %13 : vector<8x128xf32>
    %c0_10 = arith.constant 0 : index
    %c0_11 = arith.constant 0 : index
    %c0_12 = arith.constant 0 : index
    %15 = vector.load %arg3[%c0_10, %c0_11, %c0_12] : memref<1x8x128xf32, #tpu.memory_space<vmem>>, vector<1x8x128xf32>
    %16 = vector.shape_cast %15 : vector<1x8x128xf32> to vector<8x128xf32>
    %17 = vector.shape_cast %14 : vector<8x128xf32> to vector<1x8x128xf32>
    %cst = arith.constant dense<0.000000e+00> : vector<8x128xf32>
    %18 = vector.multi_reduction <add>, %17, %cst [0] : vector<1x8x128xf32> to vector<8x128xf32>
    %19 = arith.addf %16, %18 : vector<8x128xf32>
    %c0_13 = arith.constant 0 : index
    %c0_14 = arith.constant 0 : index
    %c0_15 = arith.constant 0 : index
    %20 = vector.load %arg3[%c0_13, %c0_14, %c0_15] : memref<1x8x128xf32, #tpu.memory_space<vmem>>, vector<1x8x128xf32>
    %21 = vector.shape_cast %20 : vector<1x8x128xf32> to vector<8x128xf32>
    %22 = vector.shape_cast %19 : vector<8x128xf32> to vector<1x8x128xf32>
    tpu.vector_store %arg3[%c0_13, %c0_14, %c0_15], %22 {strides = array<i32>} : memref<1x8x128xf32, #tpu.memory_space<vmem>>, vector<1x8x128xf32>,
    return
  }
  func.func @transform_0(%arg0: i32, %arg1: i32) -> (i32, i32, i32, i32) {
    %c1_i32 = arith.constant 1 : i32
    %0 = arith.muli %arg0, %c1_i32 : i32
    %1 = arith.addi %0, %arg1 : i32
    %c0_i32 = arith.constant 0 : i32
    %c0_i32_0 = arith.constant 0 : i32
    %c0_i32_1 = arith.constant 0 : i32
    %c0_i32_2 = arith.constant 0 : i32
    return %1, %c0_i32, %c0_i32_0, %c0_i32_1 : i32, i32, i32, i32
  }
  func.func @transform_1(%arg0: i32, %arg1: i32) -> (i32, i32, i32) {
    %c0_i32 = arith.constant 0 : i32
    %c0_i32_0 = arith.constant 0 : i32
    %c0_i32_1 = arith.constant 0 : i32
    return %arg0, %c0_i32, %c0_i32_0 : i32, i32, i32
  }
}

</mosaic_0001>

<llo_original>
// kernel: tpu_custom_call.1
$region0: #{tpu_custom_call.1}
  #allocation0 [shape = 'u32[]', space=smem, size = 0x4, offset = 0x4, fixed_abs, tag = 'smem constant byte address 0x4 - core index']
  #allocation1 [shape = 'u32[144,128]{1,0:T(1,128)}', space=vmem, size = 0x12000, scoped, tag = 'internal scratch']
  %s0 = inlined_call_operand.hbm [shape: f32[2,3,8,128], index: 0, kind: input, shape index: {}]
  %s1 = inlined_call_operand.hbm [shape: f32[2,8,128], index: 1, kind: output, shape index: {}]
  %s2 = sld [smem:[#allocation0]]
  $region45: #{tpu_custom_call.1} parent=0
    _
  %s4 = ssub.s32 1, %s2
  %s5 = scalar_select 0, %s4, %s2
  $region1: #{tpu_custom_call.1} parent=0
    #allocation2 [shape = 'u8[24576]{0}', space=vmem, size = 0x6000, scoped, tag = 'input window, operand 0']
    #allocation3 [shape = 's32[2]{0}', space=sflag, size = 0x8, scoped, tag = 'scoped memory for tpu_custom_call.1']
    #allocation4 [shape = 's32[2]{0}', space=sflag, size = 0x8, scoped, tag = 'scoped memory for tpu_custom_call.1']
    #allocation5 [shape = 'u8[8192]{0}', space=vmem, size = 0x2000, scoped, tag = 'output window, operand 0']
    %6 = vsyncpa [#allocation3], 0
    %s7 = scalar_lea.sflag [#allocation3], 1
    %8 = vsyncpa %s7, 0
    %9 = vsyncpa [#allocation4], 0
    %s10 = scalar_lea.sflag [#allocation4], 1
    %11 = vsyncpa %s10, 0
    loop: start=0, step=1, limit=4
    $region2: #{tpu_custom_call.1} parent=1 // loop_pre_header
      _
    $region3: #{tpu_custom_call.1} parent=1 // loop_header
      %s13 = sphi 0, %s17
      %p14 = scmp.ge.s32.totalorder %s13, 4
      %s20 = sphi 0, %s32
      %s21 = sphi 0, %s28
      %s22 = sphi 0, %s20
      %s23 = sphi 0, %s21
      %s24 = sphi 0, %s22
      %s25 = sphi 0, %s23
      %s37 = sphi 0, %s39
      %s40 = sphi 0, %s37
      %s41 = sphi 0, %s40
      %s57 = sphi 0, %s41
      %s63 = sphi 0, %s65
      %s66 = sphi 0, %s63
      %s67 = sphi 0, %s66
      %s83 = sphi 0, %s67
    $region4: #{tpu_custom_call.1} parent=1 // loop_header_branch
      %16 = sbr.rel (%p14) target = $region8
    $region5: #{tpu_custom_call.1} parent=1 // loop_body
      %s18 = ssub.s32 %s13, 1
      %s19 = ssub.s32 %s13, 2
      %s26 = sadd.s32 1, %s21
      %p27 = scmp.ge.s32.totalorder %s26, 1
      %s28 = scalar_select %p27, 0, %s26
      %s29 = sadd.s32 1, %s20
      %s30 = scalar_select %p27, %s29, %s20
      %p31 = scmp.ge.s32.totalorder %s30, 2
      %s32 = scalar_select %p31, 0, %s30
      %s33 = sadd.s32 %s20, %s21
      %s34 = sadd.s32 %s32, %s28
      %s35 = ssub.s32 %s33, %s34
      %p36 = scmp.eq.s32.totalorder %s35, 0
      %s38 = sadd.s32 %s37, 1
      %s39 = scalar_select %p36, %s37, %s38
      %p42 = pneg %p36
      %p43 = scmp.eq.s32.totalorder %s13, 1
      %p44 = por %p42, %p43
      %p45 = scmp.ne.s32.totalorder %s37, %s40
      %p46 = scmp.eq.s32.totalorder %s13, 0
      %p47 = por %p45, %p46
      %p48 = scmp.ne.s32.totalorder %s37, %s40
      %p49 = scmp.eq.s32.totalorder %s18, 1
      %p50 = por %p48, %p49
      %p51 = scmp.ne.s32.totalorder %s40, %s41
      %p52 = scmp.eq.s32.totalorder %s18, 0
      %p53 = por %p51, %p52
      %p54 = scmp.ne.s32.totalorder %s40, %s41
      %p55 = scmp.eq.s32.totalorder %s19, 1
      %p56 = por %p54, %p55
      %p58 = scmp.ne.s32.totalorder %s41, %s57
      %p59 = scmp.eq.s32.totalorder %s19, 0
      %p60 = por %p58, %p59
      %s61 = ssub.s32 %s20, %s32
      %p62 = scmp.eq.s32.totalorder %s61, 0
      %s64 = sadd.s32 %s63, 1
      %s65 = scalar_select %p62, %s63, %s64
      %p68 = pneg %p62
      %p69 = scmp.eq.s32.totalorder %s13, 1
      %p70 = por %p68, %p69
      %p71 = scmp.ne.s32.totalorder %s63, %s66
      %p72 = scmp.eq.s32.totalorder %s13, 0
      %p73 = por %p71, %p72
      %p74 = scmp.ne.s32.totalorder %s63, %s66
      %p75 = scmp.eq.s32.totalorder %s18, 1
      %p76 = por %p74, %p75
      %p77 = scmp.ne.s32.totalorder %s66, %s67
      %p78 = scmp.eq.s32.totalorder %s18, 0
      %p79 = por %p77, %p78
      %p80 = scmp.ne.s32.totalorder %s66, %s67
      %p81 = scmp.eq.s32.totalorder %s19, 1
      %p82 = por %p80, %p81
      %p84 = scmp.ne.s32.totalorder %s67, %s83
      %p85 = scmp.eq.s32.totalorder %s19, 0
      %p86 = por %p84, %p85
      %p87 = scmp.le.s32.totalorder 1, %s13
      %p88 = scmp.lt.s32.totalorder %s13, 3
      %p89 = pnand %p87, %p88
      %p90 = pneg %p89
      // Predicated region
      $region9: #{tpu_custom_call.1} parent=5 // pred_check
        _
      $region10: #{tpu_custom_call.1} parent=5 // pred_check_branch
        %92 = sbr.rel (%p89) target = $region12
      $region11: #{tpu_custom_call.1} parent=5 // pred_region
        %s93 = ssub.s32 %s13, 1
      $region12: #{tpu_custom_call.1} parent=5 // pred_fallthru
        _
      %p94 = scmp.lt.s32.totalorder %s13, 2
      // Predicated region
      $region13: #{tpu_custom_call.1} parent=5 // pred_check
        %p95 = pneg %p94
      $region14: #{tpu_custom_call.1} parent=5 // pred_check_branch
        %97 = sbr.rel (%p95) target = $region16
      $region15: #{tpu_custom_call.1} parent=5 // pred_region
        // Predicated region
        $region17: #{tpu_custom_call.1} parent=15 // pred_check
          %p98 = pneg %p47
        $region18: #{tpu_custom_call.1} parent=15 // pred_check_branch
          %100 = sbr.rel (%p98) target = $region20
        $region19: #{tpu_custom_call.1} parent=15 // pred_region
          %s101 = sand.u32 %s37, 1
          %s102 = scalar_lea.sflag [#allocation3], %s101
          %s103 = sand.u32 %s37, 1
          %s104 = smul.addr %s103, 24
          %s105 = scalar_lea.vmem [#allocation2], %s104
          %s106 = sadd.s32 %s20, %s21
          %s108 = ssub.s32 384, 384
          %109 = vsyncadd %s102, %s108
          %s110 = smul.addr %s106, 3
          %s111 = smul.addr %s110, 128
          %s112 = scalar_lea.hbm %s0, %s111
          %s113 = sshll.u32 %s105, 4
          %s114 = int_to_ptr.vmem [resolvable:$true] %s113
          %119 = dma.hbm_to_vmem [thread:$0]  %s112, 384, %s114, %s102, 128, 128, 8
        $region20: #{tpu_custom_call.1} parent=15 // pred_fallthru
          _
      $region16: #{tpu_custom_call.1} parent=5 // pred_fallthru
        _
      %p120 = scmp.le.s32.totalorder 1, %s13
      %p121 = scmp.lt.s32.totalorder %s13, 3
      %p122 = pnand %p120, %p121
      %p123 = pneg %p122
      // Predicated region
      $region21: #{tpu_custom_call.1} parent=5 // pred_check
        _
      $region22: #{tpu_custom_call.1} parent=5 // pred_check_branch
        %125 = sbr.rel (%p122) target = $region24
      $region23: #{tpu_custom_call.1} parent=5 // pred_region
        %s126 = ssub.s32 %s13, 1
        %s127 = sand.u32 %s40, 1
        %s128 = scalar_lea.sflag [#allocation3], %s127
        %s129 = sand.u32 %s40, 1
        %s130 = smul.addr %s129, 24
        %s131 = scalar_lea.vmem [#allocation2], %s130
        // Predicated region
        $region25: #{tpu_custom_call.1} parent=23 // pred_check
          %p132 = pneg %p53
        $region26: #{tpu_custom_call.1} parent=23 // pred_check_branch
          %134 = sbr.rel (%p132) target = $region28
        $region27: #{tpu_custom_call.1} parent=23 // pred_region
          %135 = dma.done %s128, 384
        $region28: #{tpu_custom_call.1} parent=23 // pred_fallthru
          _
        %s136 = sand.u32 %s40, 1
        %s137 = scalar_lea.sflag [#allocation3], %s136
        %s138 = sand.u32 %s40, 1
        %s139 = smul.addr %s138, 24
        %s140 = scalar_lea.vmem [#allocation2], %s139
        %p141 = pneg %p53
        %p142 = pneg %p50
        %p143 = pneg %p79
        %p144 = pneg %p76
        %s145 = sand.u32 %s66, 1
        %s146 = scalar_lea.sflag [#allocation4], %s145
        %s147 = sand.u32 %s66, 1
        %s148 = smul.addr %s147, 8
        %s149 = scalar_lea.vmem [#allocation5], %s148
        %s150 = sadd.s32 %s22, %s23
        %p151 = scmp.eq.s32.totalorder %s23, 0
        // Predicated region
        $region29: #{tpu_custom_call.1} parent=23 // pred_check
          %p152 = pneg %p151
        $region30: #{tpu_custom_call.1} parent=23 // pred_check_branch
          %154 = sbr.rel (%p152) target = $region32
        $region31: #{tpu_custom_call.1} parent=23 // pred_region
          %155 = vst [vmem:[%s149] sm:$0xff] 0.0
        $region32: #{tpu_custom_call.1} parent=23 // pred_fallthru
          _
        %v156 = vld [vmem:[%s131] sm:$0xff]
        %s157 = scalar_lea.vmem %s131, 8 [#allocation2]
        %v158 = vld [vmem:[%s157] sm:$0xff]
        %s159 = scalar_lea.vmem %s131, 16 [#allocation2]
        %v160 = vld [vmem:[%s159] sm:$0xff]
        %v161 = vmul.f32 %v156, %v156
        %v162 = vmul.f32 %v158, %v158
        %v163 = vadd.f32 %v161, %v162
        %v164 = vmul.f32 %v160, %v160
        %v165 = vadd.f32 %v163, %v164
        %v166 = vrsqrt.pop %v165
        %v167 = vmul.f32 %v165, %v166
        %vm168 = vcmp.eq.f32.partialorder %v165, inf
        %v169 = vsel %vm168, %v165, %v167
        %vm170 = vcmp.eq.f32.partialorder %v165, 0.0
        %v171 = vand.u32 %v165, 2147483648
        %v172 = vsel %vm170, %v171, %v169
        %v173 = vld [vmem:[%s149] sm:$0xff]
        %v174 = vadd.f32 %v172, 0.0
        %v175 = vadd.f32 %v173, %v174
        %176 = vst [vmem:[%s149] sm:$0xff] %v175
        %s177 = sand.u32 %s66, 1
        %s178 = scalar_lea.sflag [#allocation4], %s177
        %s179 = sand.u32 %s66, 1
        %s180 = smul.addr %s179, 8
        %s181 = scalar_lea.vmem [#allocation5], %s180
        // Predicated region
        $region33: #{tpu_custom_call.1} parent=23 // pred_check
          %p182 = pneg %p76
        $region34: #{tpu_custom_call.1} parent=23 // pred_check_branch
          %184 = sbr.rel (%p182) target = $region36
        $region35: #{tpu_custom_call.1} parent=23 // pred_region
          %s186 = ssub.s32 128, 128
          %187 = vsyncadd %s178, %s186
          %s188 = smul.addr %s22, 128
          %s189 = scalar_lea.hbm %s1, %s188
          %s191 = sshll.u32 %s181, 4
          %s192 = int_to_ptr.vmem [resolvable:$true] %s191
          %194 = dma.vmem_to_hbm [thread:$0]  %s192, 128, %s189, %s178
        $region36: #{tpu_custom_call.1} parent=23 // pred_fallthru
          _
      $region24: #{tpu_custom_call.1} parent=5 // pred_fallthru
        _
      %p195 = scmp.le.s32.totalorder 2, %s13
      // Predicated region
      $region37: #{tpu_custom_call.1} parent=5 // pred_check
        %p196 = pneg %p195
      $region38: #{tpu_custom_call.1} parent=5 // pred_check_branch
        %198 = sbr.rel (%p196) target = $region40
      $region39: #{tpu_custom_call.1} parent=5 // pred_region
        %s199 = ssub.s32 %s13, 2
        // Predicated region
        $region41: #{tpu_custom_call.1} parent=39 // pred_check
          %p200 = pneg %p82
        $region42: #{tpu_custom_call.1} parent=39 // pred_check_branch
          %202 = sbr.rel (%p200) target = $region44
        $region43: #{tpu_custom_call.1} parent=39 // pred_region
          %s203 = sand.u32 %s67, 1
          %s204 = scalar_lea.sflag [#allocation4], %s203
          %s205 = sand.u32 %s67, 1
          %s206 = smul.addr %s205, 8
          %s207 = scalar_lea.vmem [#allocation5], %s206
          %208 = dma.done %s204, 128
        $region44: #{tpu_custom_call.1} parent=39 // pred_fallthru
          _
      $region40: #{tpu_custom_call.1} parent=5 // pred_fallthru
        _
    $region6: #{tpu_custom_call.1} parent=1 // loop_footer
      %s17 = sadd.s32 1, %s13
    $region7: #{tpu_custom_call.1} parent=1 // loop_footer_branch
      %12 = sbr.rel target = $region3
    $region8: #{tpu_custom_call.1} parent=1 // loop_exit
      _
    %209 = vsyncpa [#allocation3], 1
    %s210 = scalar_lea.sflag [#allocation3], 1
    %211 = vsyncpa %s210, 1
    %212 = vsyncpa [#allocation4], 1
    %s213 = scalar_lea.sflag [#allocation4], 1
    %214 = vsyncpa %s213, 1

</llo_original>
